<compile_context>
chip_gen: v7x
topology: tpu7x:2x2x1
jax: 0.10.0
libtpu: 0.0.40
codegen_flags: <defaults>
</compile_context>

<pallas_src>
import functools
import math

import jax
import jax.numpy as jnp
from jax import lax
from jax.experimental import pallas as pl
from jax.experimental.pallas import tpu as pltpu

_LANE = 128
_MAX_UNROLL_LAYERS = 4          # fully unroll hidden layers up to this depth
_WEIGHT_BUF_COUNT = [1]         # 1 = single-buffered weights; falls back to 2


def _cdiv(a, b):
    return -(-a // b)


def _round_up(a, b):
    return _cdiv(a, b) * b


def _device_kind():
    try:
        return jax.devices()[0].device_kind.lower()
    except Exception:
        return ""


# ----------------------------- Pallas kernel ------------------------------ #

def _mlp_kernel(*refs, n_layers, matmul_dtype, act_dtype, unroll):
    """Runs the whole MLP on one tile of rows, in transposed layout.

    Transposed layout: features on sublanes, batch rows on lanes.

    refs (n_layers > 0):
      x_ref  : (n_in, TM)                    input rows (transposed)
      w0_ref : (n_units, n_in)               first Linear weight (out, in)
      b0_ref : (n_units, 1)
      wh_ref : (n_layers, n_units, n_units)  hidden Linear weights (out, in)
      bh_ref : (n_layers, n_units, 1)
      wo_ref : (n_units, n_out)              last Linear weight (in, out)
      bo_ref : (n_out, 1)
      o_ref  : (n_out, TM)                   output (transposed, lane-dense)
    refs (n_layers == 0): same but without wh_ref / bh_ref.
    """
    if n_layers > 0:
        x_ref, w0_ref, b0_ref, wh_ref, bh_ref, wo_ref, bo_ref, o_ref = refs
    else:
        x_ref, w0_ref, b0_ref, wo_ref, bo_ref, o_ref = refs
        wh_ref = bh_ref = None

    n_in = x_ref.shape[0]
    n_out = o_ref.shape[0]

    x = x_ref[...].astype(jnp.float32)                       # (n_in, TM)

    # ---- First layer: Linear(n_in -> U) --------------------------------- #
    if n_in <= 8:
        # VPU broadcast-MAC (outer-product accumulate): avoids a K=n_in MXU
        # call that would use only a handful of contraction lanes.
        h = w0_ref[:, 0:1] * x[0:1, :] + b0_ref[...]          # (U, TM) f32
        for k in range(1, n_in):
            h = h + w0_ref[:, k:k + 1] * x[k:k + 1, :]
    else:
        h = jnp.dot(w0_ref[...].astype(matmul_dtype), x.astype(matmul_dtype),
                    preferred_element_type=jnp.float32) + b0_ref[...]

    # ---- Hidden layers: Tanh -> Linear(U -> U) --------------------------- #
    def hidden_step(w, b, hh):
        a = jnp.tanh(hh.astype(act_dtype)).astype(matmul_dtype)
        return jnp.dot(w.astype(matmul_dtype), a,
                       preferred_element_type=jnp.float32) + b

    if n_layers > 0:
        if unroll:
            for i in range(n_layers):
                h = hidden_step(wh_ref[i], bh_ref[i], h)
        else:
            # Deep nets: keep one layer's weights/activations live at a time.
            h = lax.fori_loop(
                0, n_layers,
                lambda i, hh: hidden_step(wh_ref[i], bh_ref[i], hh), h)

    # ---- Output layer: Tanh -> Linear(U -> n_out) ------------------------ #
    a = jnp.tanh(h.astype(act_dtype))
    if n_out == 1:
        # Elementwise multiply + sublane reduction (f32): no masked (N=1) MXU
        # call, and the result is already a lane-dense (1, TM) row.
        out = jnp.sum(a.astype(jnp.float32) * wo_ref[...], axis=0,
                      keepdims=True) + bo_ref[...]
    else:
        # (n_out, TM) = wo^T @ a  (contract the n_units axis of both).
        out = lax.dot_general(
            wo_ref[...].astype(matmul_dtype), a.astype(matmul_dtype),
            (((0,), (0,)), ((), ())),
            preferred_element_type=jnp.float32) + bo_ref[...]

    o_ref[...] = out.astype(o_ref.dtype)


# ------------------------------ pallas_call -------------------------------- #

def _run_net_t(x_t, params, *, n_layers, matmul_dtype, act_dtype, tm_max):
    """Apply the MLP to a transposed (n_in, N) input matrix via pallas_call."""
    w0, b0, wh, bh, wo, bo = params
    n_in, n = x_t.shape
    n_units = w0.shape[0]
    n_out = wo.shape[1]

    # Balanced row tiling on the lane axis:
    #   * >= 2 grid steps whenever the problem is big enough so that the
    #     "parallel" axis can split across v7x's two TensorCores,
    #   * padding waste bounded (< 128 rows per step),
    #   * tm capped by the per-generation VMEM budget (tm_max).
    n_tiles = max(2, _cdiv(n, tm_max))
    tm = min(tm_max, max(_LANE, _round_up(_cdiv(n, n_tiles), _LANE)))
    grid = _cdiv(n, tm)
    n_pad = grid * tm

    x_tp = jnp.pad(x_t, ((0, 0), (0, n_pad - n)))

    # VMEM budget computed from the actual footprint (not hard-coded).
    weight_bytes = sum(int(a.size) * a.dtype.itemsize
                       for a in (w0, b0, wh, bh, wo, bo))
    io_bytes = 2 * (n_in + n_out) * tm * x_tp.dtype.itemsize   # 2x-buffered I/O
    work_bytes = 8 * n_units * tm * 4                          # live (U, TM) acts
    vmem_limit = int(min(max(io_bytes + 2 * weight_bytes + work_bytes
                             + (4 << 20), 16 << 20), 48 << 20))

    kernel = functools.partial(
        _mlp_kernel, n_layers=n_layers, matmul_dtype=matmul_dtype,
        act_dtype=act_dtype, unroll=n_layers <= _MAX_UNROLL_LAYERS)

    def build_call(weight_buf_count):
        def wspec(shape):
            idx = lambda i, _r=len(shape): (0,) * _r
            if weight_buf_count == 1:
                # Constant-index weights: single-buffered -- halves weight
                # VMEM at zero DMA cost (block is fetched exactly once).
                return pl.BlockSpec(shape, idx, pipeline_mode=pl.Buffered(1))
            return pl.BlockSpec(shape, idx)

        in_specs = [pl.BlockSpec((n_in, tm), lambda i: (0, i)),
                    wspec((n_units, n_in)), wspec((n_units, 1))]
        if n_layers > 0:
            in_specs += [wspec((n_layers, n_units, n_units)),
                         wspec((n_layers, n_units, 1))]
        in_specs += [wspec((n_units, n_out)), wspec((n_out, 1))]

        return pl.pallas_call(
            kernel,
            out_shape=jax.ShapeDtypeStruct((n_out, n_pad), x_tp.dtype),
            grid_spec=pltpu.PrefetchScalarGridSpec(
                num_scalar_prefetch=0,
                grid=(grid,),
                in_specs=in_specs,
                out_specs=pl.BlockSpec((n_out, tm), lambda i: (0, i)),
            ),
            compiler_params=pltpu.CompilerParams(
                dimension_semantics=("parallel",),
                vmem_limit_bytes=vmem_limit),
        )

    args = [x_tp, w0, b0] + ([wh, bh] if n_layers > 0 else []) + [wo, bo]

    # Prefer single-buffered weights; fall back (and remember) if this jax
    # build rejects pipeline_mode=Buffered(1).
    buf_counts = (2,) if _WEIGHT_BUF_COUNT[0] == 2 else (1, 2)
    out_t, err = None, None
    for bc in buf_counts:
        try:
            out_t = build_call(bc)(*args)
            _WEIGHT_BUF_COUNT[0] = bc
            err = None
            break
        except Exception as e:          # pragma: no cover - version fallback
            err = e
    if err is not None:
        raise err

    return out_t[:, :n].T                                     # (N, n_out)


# ------------------------------ Module wrapper ----------------------------- #

def init_mlp_params(key, n_layers, n_units, n_inputs=1, neurons_out=1,
                    dtype=jnp.float32):
    """Deterministic init mimicking torch.nn.Linear default U(-1/sqrt(fan_in), ...).

    Weights are stored in the orientation the kernel consumes:
      w0 : (n_units, n_inputs)            (out, in)
      b0 : (n_units, 1)
      wh : (n_layers, n_units, n_units)   (out, in)
      bh : (n_layers, n_units, 1)
      wo : (n_units, neurons_out)         (in, out)
      bo : (neurons_out, 1)
    """
    def linear(k, fan_in, fan_out):
        kw, kb = jax.random.split(k)
        bound = 1.0 / math.sqrt(fan_in)
        w = jax.random.uniform(kw, (fan_out, fan_in), dtype, -bound, bound)
        b = jax.random.uniform(kb, (fan_out, 1), dtype, -bound, bound)
        return w, b

    keys = jax.random.split(key, n_layers + 2)
    w0, b0 = linear(keys[0], n_inputs, n_units)
    whs, bhs = [], []
    for i in range(n_layers):
        w, b = linear(keys[1 + i], n_units, n_units)
        whs.append(w)
        bhs.append(b)
    if n_layers > 0:
        wh = jnp.stack(whs)                     # (L, U, U)
        bh = jnp.stack(bhs)                     # (L, U, 1)
    else:
        wh = jnp.zeros((0, n_units, n_units), dtype)
        bh = jnp.zeros((0, n_units, 1), dtype)
    wo_oi, bo = linear(keys[-1], n_units, neurons_out)
    wo = wo_oi.T                                # (U, n_out)
    return (w0, b0, wh, bh, wo, bo)


def mlp_forward(params, t, xy, *, aif, n_layers, precision="bf16"):
    """Equivalent of MLP.forward(t, xy).

    precision:
      "bf16" -> bf16 MXU operands (f32 accumulation); tanh in bf16 on
                v6e/v7x, f32 on v5e (no bf16 EUP there).
      "f32"  -> everything in f32 (matches the reference to ~1e-6).
    """
    kind = _device_kind()
    if precision == "f32":
        matmul_dtype = act_dtype = jnp.float32
    else:
        matmul_dtype = jnp.bfloat16
        act_dtype = jnp.float32 if "v5" in kind else jnp.bfloat16
    tm_max = 2048 if "v7" in kind else 4096     # tighter VMEM budget on v7x

    run = functools.partial(_run_net_t, params=params, n_layers=n_layers,
                            matmul_dtype=matmul_dtype, act_dtype=act_dtype,
                            tm_max=tm_max)

    if not aif:
        lead = t.shape[:-1]
        # Build the transposed (features, rows) input directly from t / xy:
        # fuses the concat with the kernel's lane-dense layout (no separate
        # concat -> pad -> transpose materialization of the whole input).
        x_t = jnp.concatenate(
            [t.reshape(-1, t.shape[-1]).T, xy.reshape(-1, xy.shape[-1]).T],
            axis=0)
        out2d = run(x_t)
        return out2d.reshape(*lead, out2d.shape[-1])
    else:
        lead = t.shape[:-1]
        x_t = t.reshape(-1, t.shape[-1]).T
        out2d = run(x_t)
        return out2d.reshape(*lead, out2d.shape[-1])[..., 0]


# Pure-JAX reference for verification (feature-last, like nn.Linear).
def _reference(params, x):
    w0, b0, wh, bh, wo, bo = params
    h = x @ w0.T + b0[:, 0]
    for i in range(wh.shape[0]):
        h = jnp.tanh(h)
        h = h @ wh[i].T + bh[i, :, 0]
    h = jnp.tanh(h)
    return h @ wo + bo[:, 0]


# ---------------------------------- main ----------------------------------- #

if __name__ == "__main__":
    key = jax.random.PRNGKey(0)
    ks = jax.random.split(key, 8)

    # Case 1: aif=False  (concat [t, xy] on last axis -> MLP)
    n_layers, n_units = 2, 32
    batch, seq = 2, 8
    t = jax.random.normal(ks[1], (batch, seq, 1), jnp.float32)
    xy = jax.random.normal(ks[2], (batch, seq, 2), jnp.float32)
    params = init_mlp_params(ks[0], n_layers, n_units, n_inputs=3, neurons_out=1)
    ref = _reference(params, jnp.concatenate([t, xy], -1).reshape(-1, 3))
    ref = ref.reshape(batch, seq, 1)

    #   1a: f32 precision -> exactness check against the reference.
    out = mlp_forward(params, t, xy, aif=False, n_layers=n_layers,
                      precision="f32")
    out = jax.block_until_ready(out)
    assert out.shape == (batch, seq, 1)
    assert jnp.allclose(out, ref, atol=1e-5, rtol=1e-5)

    #   1b: default bf16 MXU-operand path (perf path, relaxed tolerance).
    out_bf = mlp_forward(params, t, xy, aif=False, n_layers=n_layers)
    out_bf = jax.block_until_ready(out_bf)
    assert out_bf.shape == (batch, seq, 1)
    assert jnp.allclose(out_bf, ref, atol=5e-2, rtol=5e-2)

    # Case 2: aif=True  (net(t)[..., 0]), n_inputs=1.
    params2 = init_mlp_params(ks[3], n_layers, n_units, n_inputs=1, neurons_out=1)
    t2 = jax.random.normal(ks[4], (batch, seq, 1), jnp.float32)
    out2 = mlp_forward(params2, t2, None, aif=True, n_layers=n_layers,
                       precision="f32")
    out2 = jax.block_until_ready(out2)
    assert out2.shape == (batch, seq)
    ref2 = _reference(params2, t2.reshape(-1, 1)).reshape(batch, seq, 1)[..., 0]
    assert jnp.allclose(out2, ref2, atol=1e-5, rtol=1e-5)

    # Case 3: n_layers == 0 (no hidden-weight stack passed to the kernel).
    params3 = init_mlp_params(ks[5], 0, n_units, n_inputs=3, neurons_out=1)
    out3 = mlp_forward(params3, t, xy, aif=False, n_layers=0, precision="f32")
    out3 = jax.block_until_ready(out3)
    ref3 = _reference(params3, jnp.concatenate([t, xy], -1).reshape(-1, 3))
    assert jnp.allclose(out3, ref3.reshape(batch, seq, 1), atol=1e-5, rtol=1e-5)

    # Case 4: deeper net (fori_loop hidden path), multi-step "parallel" grid
    # and a non-multiple-of-128 row count (padding path).
    n_layers4 = 6
    params4 = init_mlp_params(ks[6], n_layers4, n_units, n_inputs=3,
                              neurons_out=1)
    t4 = jax.random.normal(ks[7], (4, 100, 1), jnp.float32)
    xy4 = jax.random.normal(ks[1], (4, 100, 2), jnp.float32)
    out4 = mlp_forward(params4, t4, xy4, aif=False, n_layers=n_layers4,
                       precision="f32")
    out4 = jax.block_until_ready(out4)
    ref4 = _reference(params4, jnp.concatenate([t4, xy4], -1).reshape(-1, 3))
    assert jnp.allclose(out4, ref4.reshape(4, 100, 1), atol=1e-5, rtol=1e-5)

    print("KERNEL_OK")
</pallas_src>

<mosaic_0001>
module attributes {stable_mosaic.version = 11 : i64} {
  func.func @_mlp_kernel(%arg0: i32, %arg1: memref<3x128xf32, #tpu.memory_space<vmem>>, %arg2: memref<32x3xf32, #tpu.memory_space<vmem>>, %arg3: memref<32x1xf32, #tpu.memory_space<vmem>>, %arg4: memref<2x32x32xf32, #tpu.memory_space<vmem>>, %arg5: memref<2x32x1xf32, #tpu.memory_space<vmem>>, %arg6: memref<32x1xf32, #tpu.memory_space<vmem>>, %arg7: memref<1x1xf32, #tpu.memory_space<vmem>>, %arg8: memref<1x128xf32, #tpu.memory_space<vmem>>) attributes {dimension_semantics = [#tpu.dimension_semantics<parallel>], iteration_bounds = array<i64: 1>, scalar_prefetch = 0 : i64, scratch_operands = 0 : i64, tpu.core_type = #tpu.core_type<tc>, window_params = [{transform_indices = @transform_0, window_bounds = array<i64: 3, 128>}, {pipeline_mode = #tpu.pipeline_mode<synchronous>, transform_indices = @transform_1, window_bounds = array<i64: 32, 3>}, {pipeline_mode = #tpu.pipeline_mode<synchronous>, transform_indices = @transform_2, window_bounds = array<i64: 32, 1>}, {pipeline_mode = #tpu.pipeline_mode<synchronous>, transform_indices = @transform_3, window_bounds = array<i64: 2, 32, 32>}, {pipeline_mode = #tpu.pipeline_mode<synchronous>, transform_indices = @transform_4, window_bounds = array<i64: 2, 32, 1>}, {pipeline_mode = #tpu.pipeline_mode<synchronous>, transform_indices = @transform_5, window_bounds = array<i64: 32, 1>}, {pipeline_mode = #tpu.pipeline_mode<synchronous>, transform_indices = @transform_6, window_bounds = array<i64: 1, 1>}, {transform_indices = @transform_7, window_bounds = array<i64: 1, 128>}]} {
    %c0 = arith.constant 0 : index
    %c0_0 = arith.constant 0 : index
    %0 = vector.load %arg1[%c0, %c0_0] : memref<3x128xf32, #tpu.memory_space<vmem>>, vector<3x128xf32>
    %c0_1 = arith.constant 0 : index
    %c0_2 = arith.constant 0 : index
    %1 = vector.load %arg2[%c0_1, %c0_2] : memref<32x3xf32, #tpu.memory_space<vmem>>, vector<32x1xf32>
    %2 = vector.extract_strided_slice %0 {offsets = [0, 0], sizes = [1, 128], strides = [1, 1]} : vector<3x128xf32> to vector<1x128xf32>
    %3 = vector.broadcast %1 : vector<32x1xf32> to vector<32x128xf32>
    %4 = vector.broadcast %2 : vector<1x128xf32> to vector<32x128xf32>
    %5 = arith.mulf %3, %4 : vector<32x128xf32>
    %c0_3 = arith.constant 0 : index
    %c0_4 = arith.constant 0 : index
    %6 = vector.load %arg3[%c0_3, %c0_4] : memref<32x1xf32, #tpu.memory_space<vmem>>, vector<32x1xf32>
    %7 = vector.broadcast %6 : vector<32x1xf32> to vector<32x128xf32>
    %8 = arith.addf %5, %7 : vector<32x128xf32>
    %c0_5 = arith.constant 0 : index
    %c1 = arith.constant 1 : index
    %9 = vector.load %arg2[%c0_5, %c1] : memref<32x3xf32, #tpu.memory_space<vmem>>, vector<32x1xf32>
    %10 = vector.extract_strided_slice %0 {offsets = [1, 0], sizes = [1, 128], strides = [1, 1]} : vector<3x128xf32> to vector<1x128xf32>
    %11 = vector.broadcast %9 : vector<32x1xf32> to vector<32x128xf32>
    %12 = vector.broadcast %10 : vector<1x128xf32> to vector<32x128xf32>
    %13 = arith.mulf %11, %12 : vector<32x128xf32>
    %14 = arith.addf %8, %13 : vector<32x128xf32>
    %c0_6 = arith.constant 0 : index
    %c2 = arith.constant 2 : index
    %15 = vector.load %arg2[%c0_6, %c2] : memref<32x3xf32, #tpu.memory_space<vmem>>, vector<32x1xf32>
    %16 = vector.extract_strided_slice %0 {offsets = [2, 0], sizes = [1, 128], strides = [1, 1]} : vector<3x128xf32> to vector<1x128xf32>
    %17 = vector.broadcast %15 : vector<32x1xf32> to vector<32x128xf32>
    %18 = vector.broadcast %16 : vector<1x128xf32> to vector<32x128xf32>
    %19 = arith.mulf %17, %18 : vector<32x128xf32>
    %20 = arith.addf %14, %19 : vector<32x128xf32>
    %c0_7 = arith.constant 0 : index
    %c0_8 = arith.constant 0 : index
    %c0_9 = arith.constant 0 : index
    %21 = vector.load %arg4[%c0_7, %c0_8, %c0_9] : memref<2x32x32xf32, #tpu.memory_space<vmem>>, vector<1x32x32xf32>
    %22 = vector.shape_cast %21 : vector<1x32x32xf32> to vector<32x32xf32>
    %c0_10 = arith.constant 0 : index
    %c0_11 = arith.constant 0 : index
    %c0_12 = arith.constant 0 : index
    %23 = vector.load %arg5[%c0_10, %c0_11, %c0_12] : memref<2x32x1xf32, #tpu.memory_space<vmem>>, vector<1x32x1xf32>
    %24 = vector.shape_cast %23 : vector<1x32x1xf32> to vector<32x1xf32>
    %25 = math.tanh %20 : vector<32x128xf32>
    %cst = arith.constant dense<0.000000e+00> : vector<32x128xf32>
    %26 = tpu.matmul %22, %25, %cst {dimension_numbers = #tpu.dot_dimension_numbers<[1], [0], [0], [1], [0, 0, 1, 1], [], []>} : vector<32x32xf32>, vector<32x128xf32>, vector<32x128xf32> -> vector<32x128xf32>
    %27 = vector.broadcast %24 : vector<32x1xf32> to vector<32x128xf32>
    %28 = arith.addf %26, %27 : vector<32x128xf32>
    %c1_13 = arith.constant 1 : index
    %c0_14 = arith.constant 0 : index
    %c0_15 = arith.constant 0 : index
    %29 = vector.load %arg4[%c1_13, %c0_14, %c0_15] : memref<2x32x32xf32, #tpu.memory_space<vmem>>, vector<1x32x32xf32>
    %30 = vector.shape_cast %29 : vector<1x32x32xf32> to vector<32x32xf32>
    %c1_16 = arith.constant 1 : index
    %c0_17 = arith.constant 0 : index
    %c0_18 = arith.constant 0 : index
    %31 = vector.load %arg5[%c1_16, %c0_17, %c0_18] : memref<2x32x1xf32, #tpu.memory_space<vmem>>, vector<1x32x1xf32>
    %32 = vector.shape_cast %31 : vector<1x32x1xf32> to vector<32x1xf32>
    %33 = math.tanh %28 : vector<32x128xf32>
    %cst_19 = arith.constant dense<0.000000e+00> : vector<32x128xf32>
    %34 = tpu.matmul %30, %33, %cst_19 {dimension_numbers = #tpu.dot_dimension_numbers<[1], [0], [0], [1], [0, 0, 1, 1], [], []>} : vector<32x32xf32>, vector<32x128xf32>, vector<32x128xf32> -> vector<32x128xf32>
    %35 = vector.broadcast %32 : vector<32x1xf32> to vector<32x128xf32>
    %36 = arith.addf %34, %35 : vector<32x128xf32>
    %37 = math.tanh %36 : vector<32x128xf32>
    %c0_20 = arith.constant 0 : index
    %c0_21 = arith.constant 0 : index
    %38 = vector.load %arg6[%c0_20, %c0_21] : memref<32x1xf32, #tpu.memory_space<vmem>>, vector<32x1xf32>
    %39 = vector.broadcast %38 : vector<32x1xf32> to vector<32x128xf32>
    %40 = arith.mulf %37, %39 : vector<32x128xf32>
    %cst_22 = arith.constant dense<0.000000e+00> : vector<128xf32>
    %41 = vector.multi_reduction <add>, %40, %cst_22 [0] : vector<32x128xf32> to vector<128xf32>
    %42 = vector.shape_cast %41 : vector<128xf32> to vector<1x128xf32>
    %c0_23 = arith.constant 0 : index
    %c0_24 = arith.constant 0 : index
    %43 = vector.load %arg7[%c0_23, %c0_24] : memref<1x1xf32, #tpu.memory_space<vmem>>, vector<1x1xf32>
    %44 = vector.broadcast %43 : vector<1x1xf32> to vector<1x128xf32>
    %45 = arith.addf %42, %44 : vector<1x128xf32>
    %c0_25 = arith.constant 0 : index
    %c0_26 = arith.constant 0 : index
    %46 = vector.load %arg8[%c0_25, %c0_26] : memref<1x128xf32, #tpu.memory_space<vmem>>, vector<1x128xf32>
    tpu.vector_store %arg8[%c0_25, %c0_26], %45 {strides = array<i32>} : memref<1x128xf32, #tpu.memory_space<vmem>>, vector<1x128xf32>,
    return
  }
  func.func @transform_0(%arg0: i32) -> (i32, i32) {
    %c0_i32 = arith.constant 0 : i32
    %c0_i32_0 = arith.constant 0 : i32
    return %c0_i32, %arg0 : i32, i32
  }
  func.func @transform_1(%arg0: i32) -> (i32, i32) {
    %c0_i32 = arith.constant 0 : i32
    %c0_i32_0 = arith.constant 0 : i32
    %c0_i32_1 = arith.constant 0 : i32
    return %c0_i32, %c0_i32_0 : i32, i32
  }
  func.func @transform_2(%arg0: i32) -> (i32, i32) {
    %c0_i32 = arith.constant 0 : i32
    %c0_i32_0 = arith.constant 0 : i32
    %c0_i32_1 = arith.constant 0 : i32
    return %c0_i32, %c0_i32_0 : i32, i32
  }
  func.func @transform_3(%arg0: i32) -> (i32, i32, i32) {
    %c0_i32 = arith.constant 0 : i32
    %c0_i32_0 = arith.constant 0 : i32
    %c0_i32_1 = arith.constant 0 : i32
    %c0_i32_2 = arith.constant 0 : i32
    return %c0_i32, %c0_i32_0, %c0_i32_1 : i32, i32, i32
  }
  func.func @transform_4(%arg0: i32) -> (i32, i32, i32) {
    %c0_i32 = arith.constant 0 : i32
    %c0_i32_0 = arith.constant 0 : i32
    %c0_i32_1 = arith.constant 0 : i32
    %c0_i32_2 = arith.constant 0 : i32
    return %c0_i32, %c0_i32_0, %c0_i32_1 : i32, i32, i32
  }
  func.func @transform_5(%arg0: i32) -> (i32, i32) {
    %c0_i32 = arith.constant 0 : i32
    %c0_i32_0 = arith.constant 0 : i32
    %c0_i32_1 = arith.constant 0 : i32
    return %c0_i32, %c0_i32_0 : i32, i32
  }
  func.func @transform_6(%arg0: i32) -> (i32, i32) {
    %c0_i32 = arith.constant 0 : i32
    %c0_i32_0 = arith.constant 0 : i32
    %c0_i32_1 = arith.constant 0 : i32
    return %c0_i32, %c0_i32_0 : i32, i32
  }
  func.func @transform_7(%arg0: i32) -> (i32, i32) {
    %c0_i32 = arith.constant 0 : i32
    %c0_i32_0 = arith.constant 0 : i32
    return %c0_i32, %arg0 : i32, i32
  }
}

module attributes {stable_mosaic.version = 11 : i64} {
  func.func @_mlp_kernel(%arg0: i32, %arg1: memref<3x128xf32, #tpu.memory_space<vmem>>, %arg2: memref<32x3xf32, #tpu.memory_space<vmem>>, %arg3: memref<32x1xf32, #tpu.memory_space<vmem>>, %arg4: memref<2x32x32xf32, #tpu.memory_space<vmem>>, %arg5: memref<2x32x1xf32, #tpu.memory_space<vmem>>, %arg6: memref<32x1xf32, #tpu.memory_space<vmem>>, %arg7: memref<1x1xf32, #tpu.memory_space<vmem>>, %arg8: memref<1x128xf32, #tpu.memory_space<vmem>>) attributes {dimension_semantics = [#tpu.dimension_semantics<parallel>], iteration_bounds = array<i64: 1>, scalar_prefetch = 0 : i64, scratch_operands = 0 : i64, tpu.core_type = #tpu.core_type<tc>, window_params = [{transform_indices = @transform_0, window_bounds = array<i64: 3, 128>}, {pipeline_mode = #tpu.pipeline_mode<synchronous>, transform_indices = @transform_1, window_bounds = array<i64: 32, 3>}, {pipeline_mode = #tpu.pipeline_mode<synchronous>, transform_indices = @transform_2, window_bounds = array<i64: 32, 1>}, {pipeline_mode = #tpu.pipeline_mode<synchronous>, transform_indices = @transform_3, window_bounds = array<i64: 2, 32, 32>}, {pipeline_mode = #tpu.pipeline_mode<synchronous>, transform_indices = @transform_4, window_bounds = array<i64: 2, 32, 1>}, {pipeline_mode = #tpu.pipeline_mode<synchronous>, transform_indices = @transform_5, window_bounds = array<i64: 32, 1>}, {pipeline_mode = #tpu.pipeline_mode<synchronous>, transform_indices = @transform_6, window_bounds = array<i64: 1, 1>}, {transform_indices = @transform_7, window_bounds = array<i64: 1, 128>}]} {
    %c0 = arith.constant 0 : index
    %c0_0 = arith.constant 0 : index
    %0 = vector.load %arg1[%c0, %c0_0] : memref<3x128xf32, #tpu.memory_space<vmem>>, vector<3x128xf32>
    %c0_1 = arith.constant 0 : index
    %c0_2 = arith.constant 0 : index
    %1 = vector.load %arg2[%c0_1, %c0_2] : memref<32x3xf32, #tpu.memory_space<vmem>>, vector<32x1xf32>
    %2 = vector.extract_strided_slice %0 {offsets = [0, 0], sizes = [1, 128], strides = [1, 1]} : vector<3x128xf32> to vector<1x128xf32>
    %3 = vector.broadcast %1 : vector<32x1xf32> to vector<32x128xf32>
    %4 = vector.broadcast %2 : vector<1x128xf32> to vector<32x128xf32>
    %5 = arith.mulf %3, %4 : vector<32x128xf32>
    %c0_3 = arith.constant 0 : index
    %c0_4 = arith.constant 0 : index
    %6 = vector.load %arg3[%c0_3, %c0_4] : memref<32x1xf32, #tpu.memory_space<vmem>>, vector<32x1xf32>
    %7 = vector.broadcast %6 : vector<32x1xf32> to vector<32x128xf32>
    %8 = arith.addf %5, %7 : vector<32x128xf32>
    %c0_5 = arith.constant 0 : index
    %c1 = arith.constant 1 : index
    %9 = vector.load %arg2[%c0_5, %c1] : memref<32x3xf32, #tpu.memory_space<vmem>>, vector<32x1xf32>
    %10 = vector.extract_strided_slice %0 {offsets = [1, 0], sizes = [1, 128], strides = [1, 1]} : vector<3x128xf32> to vector<1x128xf32>
    %11 = vector.broadcast %9 : vector<32x1xf32> to vector<32x128xf32>
    %12 = vector.broadcast %10 : vector<1x128xf32> to vector<32x128xf32>
    %13 = arith.mulf %11, %12 : vector<32x128xf32>
    %14 = arith.addf %8, %13 : vector<32x128xf32>
    %c0_6 = arith.constant 0 : index
    %c2 = arith.constant 2 : index
    %15 = vector.load %arg2[%c0_6, %c2] : memref<32x3xf32, #tpu.memory_space<vmem>>, vector<32x1xf32>
    %16 = vector.extract_strided_slice %0 {offsets = [2, 0], sizes = [1, 128], strides = [1, 1]} : vector<3x128xf32> to vector<1x128xf32>
    %17 = vector.broadcast %15 : vector<32x1xf32> to vector<32x128xf32>
    %18 = vector.broadcast %16 : vector<1x128xf32> to vector<32x128xf32>
    %19 = arith.mulf %17, %18 : vector<32x128xf32>
    %20 = arith.addf %14, %19 : vector<32x128xf32>
    %c0_7 = arith.constant 0 : index
    %c0_8 = arith.constant 0 : index
    %c0_9 = arith.constant 0 : index
    %21 = vector.load %arg4[%c0_7, %c0_8, %c0_9] : memref<2x32x32xf32, #tpu.memory_space<vmem>>, vector<1x32x32xf32>
    %22 = vector.shape_cast %21 : vector<1x32x32xf32> to vector<32x32xf32>
    %c0_10 = arith.constant 0 : index
    %c0_11 = arith.constant 0 : index
    %c0_12 = arith.constant 0 : index
    %23 = vector.load %arg5[%c0_10, %c0_11, %c0_12] : memref<2x32x1xf32, #tpu.memory_space<vmem>>, vector<1x32x1xf32>
    %24 = vector.shape_cast %23 : vector<1x32x1xf32> to vector<32x1xf32>
    %25 = math.tanh %20 : vector<32x128xf32>
    %cst = arith.constant dense<0.000000e+00> : vector<32x128xf32>
    %26 = tpu.matmul %22, %25, %cst {dimension_numbers = #tpu.dot_dimension_numbers<[1], [0], [0], [1], [0, 0, 1, 1], [], []>} : vector<32x32xf32>, vector<32x128xf32>, vector<32x128xf32> -> vector<32x128xf32>
    %27 = vector.broadcast %24 : vector<32x1xf32> to vector<32x128xf32>
    %28 = arith.addf %26, %27 : vector<32x128xf32>
    %c1_13 = arith.constant 1 : index
    %c0_14 = arith.constant 0 : index
    %c0_15 = arith.constant 0 : index
    %29 = vector.load %arg4[%c1_13, %c0_14, %c0_15] : memref<2x32x32xf32, #tpu.memory_space<vmem>>, vector<1x32x32xf32>
    %30 = vector.shape_cast %29 : vector<1x32x32xf32> to vector<32x32xf32>
    %c1_16 = arith.constant 1 : index
    %c0_17 = arith.constant 0 : index
    %c0_18 = arith.constant 0 : index
    %31 = vector.load %arg5[%c1_16, %c0_17, %c0_18] : memref<2x32x1xf32, #tpu.memory_space<vmem>>, vector<1x32x1xf32>
    %32 = vector.shape_cast %31 : vector<1x32x1xf32> to vector<32x1xf32>
    %33 = math.tanh %28 : vector<32x128xf32>
    %cst_19 = arith.constant dense<0.000000e+00> : vector<32x128xf32>
    %34 = tpu.matmul %30, %33, %cst_19 {dimension_numbers = #tpu.dot_dimension_numbers<[1], [0], [0], [1], [0, 0, 1, 1], [], []>} : vector<32x32xf32>, vector<32x128xf32>, vector<32x128xf32> -> vector<32x128xf32>
    %35 = vector.broadcast %32 : vector<32x1xf32> to vector<32x128xf32>
    %36 = arith.addf %34, %35 : vector<32x128xf32>
    %37 = math.tanh %36 : vector<32x128xf32>
    %c0_20 = arith.constant 0 : index
    %c0_21 = arith.constant 0 : index
    %38 = vector.load %arg6[%c0_20, %c0_21] : memref<32x1xf32, #tpu.memory_space<vmem>>, vector<32x1xf32>
    %39 = vector.broadcast %38 : vector<32x1xf32> to vector<32x128xf32>
    %40 = arith.mulf %37, %39 : vector<32x128xf32>
    %cst_22 = arith.constant dense<0.000000e+00> : vector<128xf32>
    %41 = vector.multi_reduction <add>, %40, %cst_22 [0] : vector<32x128xf32> to vector<128xf32>
    %42 = vector.shape_cast %41 : vector<128xf32> to vector<1x128xf32>
    %c0_23 = arith.constant 0 : index
    %c0_24 = arith.constant 0 : index
    %43 = vector.load %arg7[%c0_23, %c0_24] : memref<1x1xf32, #tpu.memory_space<vmem>>, vector<1x1xf32>
    %44 = vector.broadcast %43 : vector<1x1xf32> to vector<1x128xf32>
    %45 = arith.addf %42, %44 : vector<1x128xf32>
    %c0_25 = arith.constant 0 : index
    %c0_26 = arith.constant 0 : index
    %46 = vector.load %arg8[%c0_25, %c0_26] : memref<1x128xf32, #tpu.memory_space<vmem>>, vector<1x128xf32>
    tpu.vector_store %arg8[%c0_25, %c0_26], %45 {strides = array<i32>} : memref<1x128xf32, #tpu.memory_space<vmem>>, vector<1x128xf32>,
    return
  }
  func.func @transform_0(%arg0: i32) -> (i32, i32) {
    %c0_i32 = arith.constant 0 : i32
    %c0_i32_0 = arith.constant 0 : i32
    return %c0_i32, %arg0 : i32, i32
  }
  func.func @transform_1(%arg0: i32) -> (i32, i32) {
    %c0_i32 = arith.constant 0 : i32
    %c0_i32_0 = arith.constant 0 : i32
    %c0_i32_1 = arith.constant 0 : i32
    return %c0_i32, %c0_i32_0 : i32, i32
  }
  func.func @transform_2(%arg0: i32) -> (i32, i32) {
    %c0_i32 = arith.constant 0 : i32
    %c0_i32_0 = arith.constant 0 : i32
    %c0_i32_1 = arith.constant 0 : i32
    return %c0_i32, %c0_i32_0 : i32, i32
  }
  func.func @transform_3(%arg0: i32) -> (i32, i32, i32) {
    %c0_i32 = arith.constant 0 : i32
    %c0_i32_0 = arith.constant 0 : i32
    %c0_i32_1 = arith.constant 0 : i32
    %c0_i32_2 = arith.constant 0 : i32
    return %c0_i32, %c0_i32_0, %c0_i32_1 : i32, i32, i32
  }
  func.func @transform_4(%arg0: i32) -> (i32, i32, i32) {
    %c0_i32 = arith.constant 0 : i32
    %c0_i32_0 = arith.constant 0 : i32
    %c0_i32_1 = arith.constant 0 : i32
    %c0_i32_2 = arith.constant 0 : i32
    return %c0_i32, %c0_i32_0, %c0_i32_1 : i32, i32, i32
  }
  func.func @transform_5(%arg0: i32) -> (i32, i32) {
    %c0_i32 = arith.constant 0 : i32
    %c0_i32_0 = arith.constant 0 : i32
    %c0_i32_1 = arith.constant 0 : i32
    return %c0_i32, %c0_i32_0 : i32, i32
  }
  func.func @transform_6(%arg0: i32) -> (i32, i32) {
    %c0_i32 = arith.constant 0 : i32
    %c0_i32_0 = arith.constant 0 : i32
    %c0_i32_1 = arith.constant 0 : i32
    return %c0_i32, %c0_i32_0 : i32, i32
  }
  func.func @transform_7(%arg0: i32) -> (i32, i32) {
    %c0_i32 = arith.constant 0 : i32
    %c0_i32_0 = arith.constant 0 : i32
    return %c0_i32, %arg0 : i32, i32
  }
}

</mosaic_0001>

<llo_original>
// kernel: tpu_custom_call.1
$region0: #{tpu_custom_call.1}
  #allocation0 [shape = 'u32[]', space=smem, size = 0x4, offset = 0x4, fixed_abs, tag = 'smem constant byte address 0x4 - core index']
  #allocation1 [shape = 'u32[144,128]{1,0:T(1,128)}', space=vmem, size = 0x12000, scoped, tag = 'internal scratch']
  #allocation2 [shape = 'f32[1,1]{1,0:T(1,128)S(1)}', space=vmem, size = 0x200, scoped, tag = 'scoped memory for tpu_custom_call.1']
  %s0 = inlined_call_operand.vmem [shape: f32[3,128], index: 0, kind: input, shape index: {}]
  %s1 = inlined_call_operand.vmem [shape: f32[32,3], index: 1, kind: input, shape index: {}]
  %s2 = inlined_call_operand.vmem [shape: f32[32,1], index: 2, kind: input, shape index: {}]
  %s3 = inlined_call_operand.vmem [shape: f32[2,32,32], index: 3, kind: input, shape index: {}]
  %s4 = inlined_call_operand.vmem [shape: f32[2,32,1], index: 4, kind: input, shape index: {}]
  %s5 = inlined_call_operand.vmem [shape: f32[32,1], index: 5, kind: input, shape index: {}]
  %s6 = inlined_call_operand.<no memory space> [shape: f32[1,1], index: 6, kind: input, shape index: {}]
  %s7 = inlined_call_operand.hbm [shape: f32[1,128], index: 7, kind: output, shape index: {}]
  %s8 = sld [smem:[#allocation0]]
  $region38: #{tpu_custom_call.1} parent=0
    _
  %s10 = ssub.s32 1, %s8
  %s11 = scalar_select 0, %s10, %s8
  %v12 = vstv %s6
  %13 = vst [vmem:[#allocation2] sm:$0x1] %v12
  $region1: #{tpu_custom_call.1} parent=0
    #allocation3 [shape = 'u8[512]{0}', space=vmem, size = 0x400, scoped, tag = 'output window, operand 0, single buffered']
    #allocation4 [shape = 's32[1]{0}', space=sflag, size = 0x4, scoped, tag = 'scoped memory for tpu_custom_call.1']
    %14 = vsyncpa [#allocation4], 0
    // Predicated region
    $region2: #{tpu_custom_call.1} parent=1 // pred_check
      _
    $region3: #{tpu_custom_call.1} parent=1 // pred_check_branch
      %16 = sbr.rel (0) target = $region5
    $region4: #{tpu_custom_call.1} parent=1 // pred_region
      _
    $region5: #{tpu_custom_call.1} parent=1 // pred_fallthru
      _
    // Predicated region
    $region6: #{tpu_custom_call.1} parent=1 // pred_check
      _
    $region7: #{tpu_custom_call.1} parent=1 // pred_check_branch
      %18 = sbr.rel (0) target = $region9
    $region8: #{tpu_custom_call.1} parent=1 // pred_region
      _
    $region9: #{tpu_custom_call.1} parent=1 // pred_fallthru
      _
    // Predicated region
    $region10: #{tpu_custom_call.1} parent=1 // pred_check
      _
    $region11: #{tpu_custom_call.1} parent=1 // pred_check_branch
      %20 = sbr.rel (0) target = $region13
    $region12: #{tpu_custom_call.1} parent=1 // pred_region
      _
    $region13: #{tpu_custom_call.1} parent=1 // pred_fallthru
      _
    // Predicated region
    $region14: #{tpu_custom_call.1} parent=1 // pred_check
      _
    $region15: #{tpu_custom_call.1} parent=1 // pred_check_branch
      %22 = sbr.rel (0) target = $region17
    $region16: #{tpu_custom_call.1} parent=1 // pred_region
      _
    $region17: #{tpu_custom_call.1} parent=1 // pred_fallthru
      _
    // Predicated region
    $region18: #{tpu_custom_call.1} parent=1 // pred_check
      _
    $region19: #{tpu_custom_call.1} parent=1 // pred_check_branch
      %24 = sbr.rel (0) target = $region21
    $region20: #{tpu_custom_call.1} parent=1 // pred_region
      _
    $region21: #{tpu_custom_call.1} parent=1 // pred_fallthru
      _
    // Predicated region
    $region22: #{tpu_custom_call.1} parent=1 // pred_check
      _
    $region23: #{tpu_custom_call.1} parent=1 // pred_check_branch
      %26 = sbr.rel (0) target = $region25
    $region24: #{tpu_custom_call.1} parent=1 // pred_region
      _
    $region25: #{tpu_custom_call.1} parent=1 // pred_fallthru
      _
    // Predicated region
    $region26: #{tpu_custom_call.1} parent=1 // pred_check
      _
    $region27: #{tpu_custom_call.1} parent=1 // pred_check_branch
      %28 = sbr.rel (0) target = $region29
    $region28: #{tpu_custom_call.1} parent=1 // pred_region
      _
    $region29: #{tpu_custom_call.1} parent=1 // pred_fallthru
      _
    %v29 = vld [vmem:[%s0] sm:$0x7]
    %v30 = vld [vmem:[%s1] sm:$0xff]
    %v31 = vld [vmem:[%s1 + $0x8] sm:$0xff]
    %v32 = vld [vmem:[%s1 + $0x10] sm:$0xff]
    %v33 = vld [vmem:[%s1 + $0x18] sm:$0xff]
    %35 = vset.pattern.permute.xlu0 0
    %36 = vperm.xlu0 %35, %v30
    %v37 = vpop.permute.xlu0 %36
    %40 = vset.pattern.permute.xlu0 0
    %41 = vperm.xlu0 %40, %v31
    %v42 = vpop.permute.xlu0 %41
    %45 = vset.pattern.permute.xlu0 0
    %46 = vperm.xlu0 %45, %v32
    %v47 = vpop.permute.xlu0 %46
    %50 = vset.pattern.permute.xlu0 0
    %51 = vperm.xlu0 %50, %v33
    %v52 = vpop.permute.xlu0 %51
    %v54 = vlaneseq
    %v55 = vshrl.u32 %v54, 7
    %v56 = vsub.s32 0, %v55
    %v57 = vrot.slane %v29, %v56
    %v58 = vmul.f32 %v37, %v57
    %v59 = vmul.f32 %v42, %v57
    %v60 = vmul.f32 %v47, %v57
    %v61 = vmul.f32 %v52, %v57
    %v62 = vld [vmem:[%s2] sm:$0xff]
    %v63 = vld [vmem:[%s2 + $0x8] sm:$0xff]
    %v64 = vld [vmem:[%s2 + $0x10] sm:$0xff]
    %v65 = vld [vmem:[%s2 + $0x18] sm:$0xff]
    %67 = vset.pattern.permute.xlu0 0
    %68 = vperm.xlu0 %67, %v62
    %v69 = vpop.permute.xlu0 %68
    %72 = vset.pattern.permute.xlu0 0
    %73 = vperm.xlu0 %72, %v63
    %v74 = vpop.permute.xlu0 %73
    %77 = vset.pattern.permute.xlu0 0
    %78 = vperm.xlu0 %77, %v64
    %v79 = vpop.permute.xlu0 %78
    %82 = vset.pattern.permute.xlu0 0
    %83 = vperm.xlu0 %82, %v65
    %v84 = vpop.permute.xlu0 %83
    %v86 = vadd.f32 %v58, %v69
    %v87 = vadd.f32 %v59, %v74
    %v88 = vadd.f32 %v60, %v79
    %v89 = vadd.f32 %v61, %v84
    %90 = vset.pattern.permute.xlu0 1
    %91 = vperm.xlu0 %90, %v30
    %v92 = vpop.permute.xlu0 %91
    %94 = vset.pattern.permute.xlu0 1
    %95 = vperm.xlu0 %94, %v31
    %v96 = vpop.permute.xlu0 %95
    %98 = vset.pattern.permute.xlu0 1
    %99 = vperm.xlu0 %98, %v32
    %v100 = vpop.permute.xlu0 %99
    %102 = vset.pattern.permute.xlu0 1
    %103 = vperm.xlu0 %102, %v33
    %v104 = vpop.permute.xlu0 %103
    %v106 = vlaneseq
    %v107 = vshrl.u32 %v106, 7
    %v108 = vsub.s32 1, %v107
    %v109 = vrot.slane %v29, %v108
    %v110 = vmul.f32 %v92, %v109
    %v111 = vmul.f32 %v96, %v109
    %v112 = vmul.f32 %v100, %v109
    %v113 = vmul.f32 %v104, %v109
    %v114 = vadd.f32 %v86, %v110
    %v115 = vadd.f32 %v87, %v111
    %v116 = vadd.f32 %v88, %v112
    %v117 = vadd.f32 %v89, %v113
    %118 = vset.pattern.permute.xlu0 2
    %119 = vperm.xlu0 %118, %v30
    %v120 = vpop.permute.xlu0 %119
    %122 = vset.pattern.permute.xlu0 2
    %123 = vperm.xlu0 %122, %v31
    %v124 = vpop.permute.xlu0 %123
    %126 = vset.pattern.permute.xlu0 2
    %127 = vperm.xlu0 %126, %v32
    %v128 = vpop.permute.xlu0 %127
    %130 = vset.pattern.permute.xlu0 2
    %131 = vperm.xlu0 %130, %v33
    %v132 = vpop.permute.xlu0 %131
    %v134 = vlaneseq
    %v135 = vshrl.u32 %v134, 7
    %v136 = vsub.s32 2, %v135
    %v137 = vrot.slane %v29, %v136
    %v138 = vmul.f32 %v120, %v137
    %v139 = vmul.f32 %v124, %v137
    %v140 = vmul.f32 %v128, %v137
    %v141 = vmul.f32 %v132, %v137
    %v142 = vadd.f32 %v114, %v138
    %v143 = vadd.f32 %v115, %v139
    %v144 = vadd.f32 %v116, %v140
    %v145 = vadd.f32 %v117, %v141
    %v146 = vld [vmem:[%s3] sm:$0xff]
    %v147 = vld [vmem:[%s3 + $0x8] sm:$0xff]
    %v148 = vld [vmem:[%s3 + $0x10] sm:$0xff]
    %v149 = vld [vmem:[%s3 + $0x18] sm:$0xff]
    %v150 = vld [vmem:[%s4] sm:$0xff]
    %v151 = vld [vmem:[%s4 + $0x8] sm:$0xff]
    %v152 = vld [vmem:[%s4 + $0x10] sm:$0xff]
    %v153 = vld [vmem:[%s4 + $0x18] sm:$0xff]
    %v154 = vtanh.pop %v142
    %v155 = vtanh.pop %v143
    %v156 = vtanh.pop %v144
    %v157 = vtanh.pop %v145
    %159 = vset.pattern.permute.xlu0 0
    %160 = vperm.xlu0 %159, %v150
    %v161 = vpop.permute.xlu0 %160
    %164 = vset.pattern.permute.xlu0 0
    %165 = vperm.xlu0 %164, %v151
    %v166 = vpop.permute.xlu0 %165
    %169 = vset.pattern.permute.xlu0 0
    %170 = vperm.xlu0 %169, %v152
    %v171 = vpop.permute.xlu0 %170
    %174 = vset.pattern.permute.xlu0 0
    %175 = vperm.xlu0 %174, %v153
    %v176 = vpop.permute.xlu0 %175
    %vm178 = vcmask 261120
    %v180 = vsel %vm178, %v146, 0
    %v183 = vsel %vm178, %v147, 0
    %v186 = vsel %vm178, %v148, 0
    %v189 = vsel %vm178, %v149, 0
    %191 = vmatprep.subr.mxu0 0.0
    %192 = vmatpush1.msra.mxu0 %v154
    %193 = vmatprep.subr.mxu0 0.0
    %194 = vmatpush1.msra.mxu0 %v155
    %195 = vmatprep.subr.mxu0 0.0
    %196 = vmatpush1.msra.mxu0 %v156
    %197 = vmatprep.subr.mxu0 0.0
    %198 = vmatpush1.msra.mxu0 %v157
    %199 = vmatprep.subr.mxu0 0.0
    %200 = vmatpush1.msra.mxu0 0.0
    %201 = vmatprep.subr.mxu0 0.0
    %202 = vmatpush1.msra.mxu0 0.0
    %203 = vmatprep.subr.mxu0 0.0
    %204 = vmatpush1.msra.mxu0 0.0
    %205 = vmatprep.subr.mxu0 0.0
    %206 = vmatpush1.msra.mxu0 0.0
    %207 = vmatprep.subr.mxu0 0.0
    %208 = vmatpush1.msra.mxu0 0.0
    %209 = vmatprep.subr.mxu0 0.0
    %210 = vmatpush1.msra.mxu0 0.0
    %211 = vmatprep.subr.mxu0 0.0
    %212 = vmatpush1.msra.mxu0 0.0
    %213 = vmatprep.subr.mxu0 0.0
    %214 = vmatpush1.msra.mxu0 0.0
    %215 = vmatprep.subr.mxu0 0.0
    %216 = vmatpush1.msra.mxu0 0.0
    %217 = vmatprep.subr.mxu0 0.0
    %218 = vmatpush1.msra.mxu0 0.0
    %219 = vmatprep.subr.mxu0 0.0
    %220 = vmatpush1.msra.mxu0 0.0
    %221 = vmatprep.subr.mxu0 0.0
    %222 = vmatpush1.msra.mxu0 0.0
    %223 = vmatprep.subr.mxu0 0.0
    %224 = vmatpush1.msra.mxu0 0.0
    %225 = vmatprep.subr.mxu0 0.0
    %226 = vmatpush1.msra.mxu0 0.0
    %227 = vmatprep.subr.mxu0 0.0
    %228 = vmatpush1.msra.mxu0 0.0
    %229 = vmatprep.subr.mxu0 0.0
    %230 = vmatpush1.msra.mxu0 0.0
    %231 = vmatprep.subr.mxu0 0.0
    %232 = vmatpush1.msra.mxu0 0.0
    %233 = vmatprep.subr.mxu0 0.0
    %234 = vmatpush1.msra.mxu0 0.0
    %235 = vmatprep.subr.mxu0 0.0
    %236 = vmatpush1.msra.mxu0 0.0
    %237 = vmatprep.subr.mxu0 0.0
    %238 = vmatpush1.msra.mxu0 0.0
    %239 = vmatprep.subr.mxu0 0.0
    %240 = vmatpush1.msra.mxu0 0.0
    %241 = vmatprep.subr.mxu0 0.0
    %242 = vmatpush1.msra.mxu0 0.0
    %243 = vmatprep.subr.mxu0 0.0
    %244 = vmatpush1.msra.mxu0 0.0
    %245 = vmatprep.subr.mxu0 0.0
    %246 = vmatpush1.msra.mxu0 0.0
    %247 = vmatprep.subr.mxu0 0.0
    %248 = vmatpush1.msra.mxu0 0.0
    %249 = vmatprep.subr.mxu0 0.0
    %250 = vmatpush1.msra.mxu0 0.0
    %251 = vmatprep.subr.mxu0 0.0
    %252 = vmatpush1.msra.mxu0 0.0
    %253 = vmatprep.subr.mxu0 0.0
    %254 = vmatpush1.msra.mxu0 0.0
    %255 = vmatprep.mubr.f32.mxu0 0.0
    %256 = vmatmul.mubr.f32.gmra.mrb[0].mxu0 %v180
    %v257 = vpop.f32.mrb[0].mxu0
    %v258 = vadd.f32 %v161, %v257
    %v259 = vpop.f32.mrb[0].mxu0
    %260 = vmatprep.mubr.f32.mxu0 0.0
    %261 = vmatmul.mubr.f32.gmra.mrb[0].mxu0 %v183
    %v262 = vpop.f32.mrb[0].mxu0
    %v263 = vadd.f32 %v166, %v262
    %v264 = vpop.f32.mrb[0].mxu0
    %265 = vmatprep.mubr.f32.mxu0 0.0
    %266 = vmatmul.mubr.f32.gmra.mrb[0].mxu0 %v186
    %v267 = vpop.f32.mrb[0].mxu0
    %v268 = vadd.f32 %v171, %v267
    %v269 = vpop.f32.mrb[0].mxu0
    %270 = vmatprep.mubr.f32.mxu0 0.0
    %271 = vmatmul.mubr.f32.gmra.mrb[0].mxu0 %v189
    %v272 = vpop.f32.mrb[0].mxu0
    %v273 = vadd.f32 %v176, %v272
    %v274 = vpop.f32.mrb[0].mxu0
    %275 = vdwg.mxu0
    %s276 = scalar_lea.vmem %s3, 32
    %v277 = vld [vmem:[%s276] sm:$0xff]
    %v278 = vld [vmem:[%s276 + $0x8] sm:$0xff]
    %v279 = vld [vmem:[%s276 + $0x10] sm:$0xff]
    %v280 = vld [vmem:[%s276 + $0x18] sm:$0xff]
    %s281 = scalar_lea.vmem %s4, 32
    %v282 = vld [vmem:[%s281] sm:$0xff]
    %v283 = vld [vmem:[%s281 + $0x8] sm:$0xff]
    %v284 = vld [vmem:[%s281 + $0x10] sm:$0xff]
    %v285 = vld [vmem:[%s281 + $0x18] sm:$0xff]
    %v286 = vtanh.pop %v258
    %v287 = vtanh.pop %v263
    %v288 = vtanh.pop %v268
    %v289 = vtanh.pop %v273
    %291 = vset.pattern.permute.xlu0 0
    %292 = vperm.xlu0 %291, %v282
    %v293 = vpop.permute.xlu0 %292
    %296 = vset.pattern.permute.xlu0 0
    %297 = vperm.xlu0 %296, %v283
    %v298 = vpop.permute.xlu0 %297
    %301 = vset.pattern.permute.xlu0 0
    %302 = vperm.xlu0 %301, %v284
    %v303 = vpop.permute.xlu0 %302
    %306 = vset.pattern.permute.xlu0 0
    %307 = vperm.xlu0 %306, %v285
    %v308 = vpop.permute.xlu0 %307
    %v311 = vsel %vm178, %v277, 0
    %v314 = vsel %vm178, %v278, 0
    %v317 = vsel %vm178, %v279, 0
    %v320 = vsel %vm178, %v280, 0
    %322 = vmatprep.subr.mxu0 0.0
    %323 = vmatpush1.msra.mxu0 %v286
    %324 = vmatprep.subr.mxu0 0.0
    %325 = vmatpush1.msra.mxu0 %v287
    %326 = vmatprep.subr.mxu0 0.0
    %327 = vmatpush1.msra.mxu0 %v288
    %328 = vmatprep.subr.mxu0 0.0
    %329 = vmatpush1.msra.mxu0 %v289
    %330 = vmatprep.subr.mxu0 0.0
    %331 = vmatpush1.msra.mxu0 0.0
    %332 = vmatprep.subr.mxu0 0.0
    %333 = vmatpush1.msra.mxu0 0.0
    %334 = vmatprep.subr.mxu0 0.0
    %335 = vmatpush1.msra.mxu0 0.0
    %336 = vmatprep.subr.mxu0 0.0
    %337 = vmatpush1.msra.mxu0 0.0
    %338 = vmatprep.subr.mxu0 0.0
    %339 = vmatpush1.msra.mxu0 0.0
    %340 = vmatprep.subr.mxu0 0.0
    %341 = vmatpush1.msra.mxu0 0.0
    %342 = vmatprep.subr.mxu0 0.0
    %343 = vmatpush1.msra.mxu0 0.0
    %344 = vmatprep.subr.mxu0 0.0
    %345 = vmatpush1.msra.mxu0 0.0
    %346 = vmatprep.subr.mxu0 0.0
    %347 = vmatpush1.msra.mxu0 0.0
    %348 = vmatprep.subr.mxu0 0.0
    %349 = vmatpush1.msra.mxu0 0.0
    %350 = vmatprep.subr.mxu0 0.0
    %351 = vmatpush1.msra.mxu0 0.0
    %352 = vmatprep.subr.mxu0 0.0
    %353 = vmatpush1.msra.mxu0 0.0
    %354 = vmatprep.subr.mxu0 0.0
    %355 = vmatpush1.msra.mxu0 0.0
    %356 = vmatprep.subr.mxu0 0.0
    %357 = vmatpush1.msra.mxu0 0.0
    %358 = vmatprep.subr.mxu0 0.0
    %359 = vmatpush1.msra.mxu0 0.0
    %360 = vmatprep.subr.mxu0 0.0
    %361 = vmatpush1.msra.mxu0 0.0
    %362 = vmatprep.subr.mxu0 0.0
    %363 = vmatpush1.msra.mxu0 0.0
    %364 = vmatprep.subr.mxu0 0.0
    %365 = vmatpush1.msra.mxu0 0.0
    %366 = vmatprep.subr.mxu0 0.0
    %367 = vmatpush1.msra.mxu0 0.0
    %368 = vmatprep.subr.mxu0 0.0
    %369 = vmatpush1.msra.mxu0 0.0
    %370 = vmatprep.subr.mxu0 0.0
    %371 = vmatpush1.msra.mxu0 0.0
    %372 = vmatprep.subr.mxu0 0.0
    %373 = vmatpush1.msra.mxu0 0.0
    %374 = vmatprep.subr.mxu0 0.0
    %375 = vmatpush1.msra.mxu0 0.0
    %376 = vmatprep.subr.mxu0 0.0
    %377 = vmatpush1.msra.mxu0 0.0
    %378 = vmatprep.subr.mxu0 0.0
    %379 = vmatpush1.msra.mxu0 0.0
    %380 = vmatprep.subr.mxu0 0.0
    %381 = vmatpush1.msra.mxu0 0.0
    %382 = vmatprep.subr.mxu0 0.0
    %383 = vmatpush1.msra.mxu0 0.0
    %384 = vmatprep.subr.mxu0 0.0
    %385 = vmatpush1.msra.mxu0 0.0
    %386 = vmatprep.mubr.f32.mxu0 0.0
    %387 = vmatmul.mubr.f32.gmra.mrb[0].mxu0 %v311
    %v388 = vpop.f32.mrb[0].mxu0
    %v389 = vadd.f32 %v293, %v388
    %v390 = vpop.f32.mrb[0].mxu0
    %391 = vmatprep.mubr.f32.mxu0 0.0
    %392 = vmatmul.mubr.f32.gmra.mrb[0].mxu0 %v314
    %v393 = vpop.f32.mrb[0].mxu0
    %v394 = vadd.f32 %v298, %v393
    %v395 = vpop.f32.mrb[0].mxu0
    %396 = vmatprep.mubr.f32.mxu0 0.0
    %397 = vmatmul.mubr.f32.gmra.mrb[0].mxu0 %v317
    %v398 = vpop.f32.mrb[0].mxu0
    %v399 = vadd.f32 %v303, %v398
    %v400 = vpop.f32.mrb[0].mxu0
    %401 = vmatprep.mubr.f32.mxu0 0.0
    %402 = vmatmul.mubr.f32.gmra.mrb[0].mxu0 %v320
    %v403 = vpop.f32.mrb[0].mxu0
    %v404 = vadd.f32 %v308, %v403
    %v405 = vpop.f32.mrb[0].mxu0
    %406 = vdwg.mxu0
    %v407 = vtanh.pop %v389
    %v408 = vtanh.pop %v394
    %v409 = vtanh.pop %v399
    %v410 = vtanh.pop %v404
    %v411 = vld [vmem:[%s5] sm:$0xff]
    %v412 = vld [vmem:[%s5 + $0x8] sm:$0xff]
    %v413 = vld [vmem:[%s5 + $0x10] sm:$0xff]
    %v414 = vld [vmem:[%s5 + $0x18] sm:$0xff]
    %416 = vset.pattern.permute.xlu0 0
    %417 = vperm.xlu0 %416, %v411
    %v418 = vpop.permute.xlu0 %417
    %421 = vset.pattern.permute.xlu0 0
    %422 = vperm.xlu0 %421, %v412
    %v423 = vpop.permute.xlu0 %422
    %426 = vset.pattern.permute.xlu0 0
    %427 = vperm.xlu0 %426, %v413
    %v428 = vpop.permute.xlu0 %427
    %431 = vset.pattern.permute.xlu0 0
    %432 = vperm.xlu0 %431, %v414
    %v433 = vpop.permute.xlu0 %432
    %v435 = vmul.f32 %v407, %v418
    %v436 = vmul.f32 %v408, %v423
    %v437 = vmul.f32 %v409, %v428
    %v438 = vmul.f32 %v410, %v433
    %v439 = vadd.f32 %v435, %v436
    %v440 = vadd.f32 %v439, %v437
    %v441 = vadd.f32 %v440, %v438
    %v442 = vrot.slane %v441, 4
    %v443 = vadd.f32 %v441, %v442
    %v444 = vrot.slane %v443, 2
    %v445 = vadd.f32 %v443, %v444
    %v446 = vrot.slane %v445, 1
    %v447 = vadd.f32 %v445, %v446
    %v448 = vld [vmem:[#allocation2] sm:$0x1]
    %450 = vset.pattern.permute.xlu0 0
    %451 = vperm.xlu0 %450, %v448
    %v452 = vpop.permute.xlu0 %451
    %v454 = vlaneseq
    %v455 = vshrl.u32 %v454, 7
    %v456 = vsub.s32 0, %v455
    %v457 = vrot.slane %v452, %v456
    %v458 = vadd.f32 %v447, %v457
    %459 = vst [vmem:[#allocation3] sm:$0x1] %v458
    // Predicated region
    $region30: #{tpu_custom_call.1} parent=1 // pred_check
      _
    $region31: #{tpu_custom_call.1} parent=1 // pred_check_branch
      %461 = sbr.rel (0) target = $region33
    $region32: #{tpu_custom_call.1} parent=1 // pred_region
      %s463 = ssub.s32 16, 16
      %464 = vsyncadd [#allocation4], %s463
      %s466 = sshll.u32 [#allocation3], 4
      %s467 = int_to_ptr.vmem [resolvable:$true] %s466
      %469 = dma.vmem_to_hbm [thread:$0]  %s467, 16, %s7, [#allocation4]
    $region33: #{tpu_custom_call.1} parent=1 // pred_fallthru
      _
    // Predicated region
    $region34: #{tpu_custom_call.1} parent=1 // pred_check
      _
    $region35: #{tpu_custom_call.1} parent=1 // pred_check_branch
      %471 = sbr.rel (0) target = $region37
    $region36: #{tpu_custom_call.1} parent=1 // pred_region
      %472 = dma.done [#allocation4], 16
    $region37: #{tpu_custom_call.1} parent=1 // pred_fallthru
      _
    %473 = vsyncpa [#allocation4], 1

// kernel: tpu_custom_call.1
$region0: #{tpu_custom_call.1}
  #allocation0 [shape = 'u32[]', space=smem, size = 0x4, offset = 0x4, fixed_abs, tag = 'smem constant byte address 0x4 - core index']
  #allocation1 [shape = 'u32[144,128]{1,0:T(1,128)}', space=vmem, size = 0x12000, scoped, tag = 'internal scratch']
  #allocation2 [shape = 'f32[1,1]{1,0:T(1,128)S(1)}', space=vmem, size = 0x200, scoped, tag = 'scoped memory for tpu_custom_call.1']
  %s0 = inlined_call_operand.vmem [shape: f32[3,128], index: 0, kind: input, shape index: {}]
  %s1 = inlined_call_operand.vmem [shape: f32[32,3], index: 1, kind: input, shape index: {}]
  %s2 = inlined_call_operand.vmem [shape: f32[32,1], index: 2, kind: input, shape index: {}]
  %s3 = inlined_call_operand.vmem [shape: f32[2,32,32], index: 3, kind: input, shape index: {}]
  %s4 = inlined_call_operand.vmem [shape: f32[2,32,1], index: 4, kind: input, shape index: {}]
  %s5 = inlined_call_operand.vmem [shape: f32[32,1], index: 5, kind: input, shape index: {}]
  %s6 = inlined_call_operand.<no memory space> [shape: f32[1,1], index: 6, kind: input, shape index: {}]
  %s7 = inlined_call_operand.hbm [shape: f32[1,128], index: 7, kind: output, shape index: {}]
  %s8 = sld [smem:[#allocation0]]
  $region38: #{tpu_custom_call.1} parent=0
    _
  %s10 = ssub.s32 1, %s8
  %s11 = scalar_select 0, %s10, %s8
  %v12 = vstv %s6
  %13 = vst [vmem:[#allocation2] sm:$0x1] %v12
  $region1: #{tpu_custom_call.1} parent=0
    #allocation3 [shape = 'u8[512]{0}', space=vmem, size = 0x400, scoped, tag = 'output window, operand 0, single buffered']
    #allocation4 [shape = 's32[1]{0}', space=sflag, size = 0x4, scoped, tag = 'scoped memory for tpu_custom_call.1']
    %14 = vsyncpa [#allocation4], 0
    // Predicated region
    $region2: #{tpu_custom_call.1} parent=1 // pred_check
      _
    $region3: #{tpu_custom_call.1} parent=1 // pred_check_branch
      %16 = sbr.rel (0) target = $region5
    $region4: #{tpu_custom_call.1} parent=1 // pred_region
      _
    $region5: #{tpu_custom_call.1} parent=1 // pred_fallthru
      _
    // Predicated region
    $region6: #{tpu_custom_call.1} parent=1 // pred_check
      _
    $region7: #{tpu_custom_call.1} parent=1 // pred_check_branch
      %18 = sbr.rel (0) target = $region9
    $region8: #{tpu_custom_call.1} parent=1 // pred_region
      _
    $region9: #{tpu_custom_call.1} parent=1 // pred_fallthru
      _
    // Predicated region
    $region10: #{tpu_custom_call.1} parent=1 // pred_check
      _
    $region11: #{tpu_custom_call.1} parent=1 // pred_check_branch
      %20 = sbr.rel (0) target = $region13
    $region12: #{tpu_custom_call.1} parent=1 // pred_region
      _
    $region13: #{tpu_custom_call.1} parent=1 // pred_fallthru
      _
    // Predicated region
    $region14: #{tpu_custom_call.1} parent=1 // pred_check
      _
    $region15: #{tpu_custom_call.1} parent=1 // pred_check_branch
      %22 = sbr.rel (0) target = $region17
    $region16: #{tpu_custom_call.1} parent=1 // pred_region
      _
    $region17: #{tpu_custom_call.1} parent=1 // pred_fallthru
      _
    // Predicated region
    $region18: #{tpu_custom_call.1} parent=1 // pred_check
      _
    $region19: #{tpu_custom_call.1} parent=1 // pred_check_branch
      %24 = sbr.rel (0) target = $region21
    $region20: #{tpu_custom_call.1} parent=1 // pred_region
      _
    $region21: #{tpu_custom_call.1} parent=1 // pred_fallthru
      _
    // Predicated region
    $region22: #{tpu_custom_call.1} parent=1 // pred_check
      _
    $region23: #{tpu_custom_call.1} parent=1 // pred_check_branch
      %26 = sbr.rel (0) target = $region25
    $region24: #{tpu_custom_call.1} parent=1 // pred_region
      _
    $region25: #{tpu_custom_call.1} parent=1 // pred_fallthru
      _
    // Predicated region
    $region26: #{tpu_custom_call.1} parent=1 // pred_check
      _
    $region27: #{tpu_custom_call.1} parent=1 // pred_check_branch
      %28 = sbr.rel (0) target = $region29
    $region28: #{tpu_custom_call.1} parent=1 // pred_region
      _
    $region29: #{tpu_custom_call.1} parent=1 // pred_fallthru
      _
    %v29 = vld [vmem:[%s0] sm:$0x7]
    %v30 = vld [vmem:[%s1] sm:$0xff]
    %v31 = vld [vmem:[%s1 + $0x8] sm:$0xff]
    %v32 = vld [vmem:[%s1 + $0x10] sm:$0xff]
    %v33 = vld [vmem:[%s1 + $0x18] sm:$0xff]
    %35 = vset.pattern.permute.xlu0 0
    %36 = vperm.xlu0 %35, %v30
    %v37 = vpop.permute.xlu0 %36
    %40 = vset.pattern.permute.xlu0 0
    %41 = vperm.xlu0 %40, %v31
    %v42 = vpop.permute.xlu0 %41
    %45 = vset.pattern.permute.xlu0 0
    %46 = vperm.xlu0 %45, %v32
    %v47 = vpop.permute.xlu0 %46
    %50 = vset.pattern.permute.xlu0 0
    %51 = vperm.xlu0 %50, %v33
    %v52 = vpop.permute.xlu0 %51
    %v54 = vlaneseq
    %v55 = vshrl.u32 %v54, 7
    %v56 = vsub.s32 0, %v55
    %v57 = vrot.slane %v29, %v56
    %v58 = vmul.f32 %v37, %v57
    %v59 = vmul.f32 %v42, %v57
    %v60 = vmul.f32 %v47, %v57
    %v61 = vmul.f32 %v52, %v57
    %v62 = vld [vmem:[%s2] sm:$0xff]
    %v63 = vld [vmem:[%s2 + $0x8] sm:$0xff]
    %v64 = vld [vmem:[%s2 + $0x10] sm:$0xff]
    %v65 = vld [vmem:[%s2 + $0x18] sm:$0xff]
    %67 = vset.pattern.permute.xlu0 0
    %68 = vperm.xlu0 %67, %v62
    %v69 = vpop.permute.xlu0 %68
    %72 = vset.pattern.permute.xlu0 0
    %73 = vperm.xlu0 %72, %v63
    %v74 = vpop.permute.xlu0 %73
    %77 = vset.pattern.permute.xlu0 0
    %78 = vperm.xlu0 %77, %v64
    %v79 = vpop.permute.xlu0 %78
    %82 = vset.pattern.permute.xlu0 0
    %83 = vperm.xlu0 %82, %v65
    %v84 = vpop.permute.xlu0 %83
    %v86 = vadd.f32 %v58, %v69
    %v87 = vadd.f32 %v59, %v74
    %v88 = vadd.f32 %v60, %v79
    %v89 = vadd.f32 %v61, %v84
    %90 = vset.pattern.permute.xlu0 1
    %91 = vperm.xlu0 %90, %v30
    %v92 = vpop.permute.xlu0 %91
    %94 = vset.pattern.permute.xlu0 1
    %95 = vperm.xlu0 %94, %v31
    %v96 = vpop.permute.xlu0 %95
    %98 = vset.pattern.permute.xlu0 1
    %99 = vperm.xlu0 %98, %v32
    %v100 = vpop.permute.xlu0 %99
    %102 = vset.pattern.permute.xlu0 1
    %103 = vperm.xlu0 %102, %v33
    %v104 = vpop.permute.xlu0 %103
    %v106 = vlaneseq
    %v107 = vshrl.u32 %v106, 7
    %v108 = vsub.s32 1, %v107
    %v109 = vrot.slane %v29, %v108
    %v110 = vmul.f32 %v92, %v109
    %v111 = vmul.f32 %v96, %v109
    %v112 = vmul.f32 %v100, %v109
    %v113 = vmul.f32 %v104, %v109
    %v114 = vadd.f32 %v86, %v110
    %v115 = vadd.f32 %v87, %v111
    %v116 = vadd.f32 %v88, %v112
    %v117 = vadd.f32 %v89, %v113
    %118 = vset.pattern.permute.xlu0 2
    %119 = vperm.xlu0 %118, %v30
    %v120 = vpop.permute.xlu0 %119
    %122 = vset.pattern.permute.xlu0 2
    %123 = vperm.xlu0 %122, %v31
    %v124 = vpop.permute.xlu0 %123
    %126 = vset.pattern.permute.xlu0 2
    %127 = vperm.xlu0 %126, %v32
    %v128 = vpop.permute.xlu0 %127
    %130 = vset.pattern.permute.xlu0 2
    %131 = vperm.xlu0 %130, %v33
    %v132 = vpop.permute.xlu0 %131
    %v134 = vlaneseq
    %v135 = vshrl.u32 %v134, 7
    %v136 = vsub.s32 2, %v135
    %v137 = vrot.slane %v29, %v136
    %v138 = vmul.f32 %v120, %v137
    %v139 = vmul.f32 %v124, %v137
    %v140 = vmul.f32 %v128, %v137
    %v141 = vmul.f32 %v132, %v137
    %v142 = vadd.f32 %v114, %v138
    %v143 = vadd.f32 %v115, %v139
    %v144 = vadd.f32 %v116, %v140
    %v145 = vadd.f32 %v117, %v141
    %v146 = vld [vmem:[%s3] sm:$0xff]
    %v147 = vld [vmem:[%s3 + $0x8] sm:$0xff]
    %v148 = vld [vmem:[%s3 + $0x10] sm:$0xff]
    %v149 = vld [vmem:[%s3 + $0x18] sm:$0xff]
    %v150 = vld [vmem:[%s4] sm:$0xff]
    %v151 = vld [vmem:[%s4 + $0x8] sm:$0xff]
    %v152 = vld [vmem:[%s4 + $0x10] sm:$0xff]
    %v153 = vld [vmem:[%s4 + $0x18] sm:$0xff]
    %v154 = vtanh.pop %v142
    %v155 = vtanh.pop %v143
    %v156 = vtanh.pop %v144
    %v157 = vtanh.pop %v145
    %159 = vset.pattern.permute.xlu0 0
    %160 = vperm.xlu0 %159, %v150
    %v161 = vpop.permute.xlu0 %160
    %164 = vset.pattern.permute.xlu0 0
    %165 = vperm.xlu0 %164, %v151
    %v166 = vpop.permute.xlu0 %165
    %169 = vset.pattern.permute.xlu0 0
    %170 = vperm.xlu0 %169, %v152
    %v171 = vpop.permute.xlu0 %170
    %174 = vset.pattern.permute.xlu0 0
    %175 = vperm.xlu0 %174, %v153
    %v176 = vpop.permute.xlu0 %175
    %vm178 = vcmask 261120
    %v180 = vsel %vm178, %v146, 0
    %v183 = vsel %vm178, %v147, 0
    %v186 = vsel %vm178, %v148, 0
    %v189 = vsel %vm178, %v149, 0
    %191 = vmatprep.subr.mxu0 0.0
    %192 = vmatpush1.msra.mxu0 %v154
    %193 = vmatprep.subr.mxu0 0.0
    %194 = vmatpush1.msra.mxu0 %v155
    %195 = vmatprep.subr.mxu0 0.0
    %196 = vmatpush1.msra.mxu0 %v156
    %197 = vmatprep.subr.mxu0 0.0
    %198 = vmatpush1.msra.mxu0 %v157
    %199 = vmatprep.subr.mxu0 0.0
    %200 = vmatpush1.msra.mxu0 0.0
    %201 = vmatprep.subr.mxu0 0.0
    %202 = vmatpush1.msra.mxu0 0.0
    %203 = vmatprep.subr.mxu0 0.0
    %204 = vmatpush1.msra.mxu0 0.0
    %205 = vmatprep.subr.mxu0 0.0
    %206 = vmatpush1.msra.mxu0 0.0
    %207 = vmatprep.subr.mxu0 0.0
    %208 = vmatpush1.msra.mxu0 0.0
    %209 = vmatprep.subr.mxu0 0.0
    %210 = vmatpush1.msra.mxu0 0.0
    %211 = vmatprep.subr.mxu0 0.0
    %212 = vmatpush1.msra.mxu0 0.0
    %213 = vmatprep.subr.mxu0 0.0
    %214 = vmatpush1.msra.mxu0 0.0
    %215 = vmatprep.subr.mxu0 0.0
    %216 = vmatpush1.msra.mxu0 0.0
    %217 = vmatprep.subr.mxu0 0.0
    %218 = vmatpush1.msra.mxu0 0.0
    %219 = vmatprep.subr.mxu0 0.0
    %220 = vmatpush1.msra.mxu0 0.0
    %221 = vmatprep.subr.mxu0 0.0
    %222 = vmatpush1.msra.mxu0 0.0
    %223 = vmatprep.subr.mxu0 0.0
    %224 = vmatpush1.msra.mxu0 0.0
    %225 = vmatprep.subr.mxu0 0.0
    %226 = vmatpush1.msra.mxu0 0.0
    %227 = vmatprep.subr.mxu0 0.0
    %228 = vmatpush1.msra.mxu0 0.0
    %229 = vmatprep.subr.mxu0 0.0
    %230 = vmatpush1.msra.mxu0 0.0
    %231 = vmatprep.subr.mxu0 0.0
    %232 = vmatpush1.msra.mxu0 0.0
    %233 = vmatprep.subr.mxu0 0.0
    %234 = vmatpush1.msra.mxu0 0.0
    %235 = vmatprep.subr.mxu0 0.0
    %236 = vmatpush1.msra.mxu0 0.0
    %237 = vmatprep.subr.mxu0 0.0
    %238 = vmatpush1.msra.mxu0 0.0
    %239 = vmatprep.subr.mxu0 0.0
    %240 = vmatpush1.msra.mxu0 0.0
    %241 = vmatprep.subr.mxu0 0.0
    %242 = vmatpush1.msra.mxu0 0.0
    %243 = vmatprep.subr.mxu0 0.0
    %244 = vmatpush1.msra.mxu0 0.0
    %245 = vmatprep.subr.mxu0 0.0
    %246 = vmatpush1.msra.mxu0 0.0
    %247 = vmatprep.subr.mxu0 0.0
    %248 = vmatpush1.msra.mxu0 0.0
    %249 = vmatprep.subr.mxu0 0.0
    %250 = vmatpush1.msra.mxu0 0.0
    %251 = vmatprep.subr.mxu0 0.0
    %252 = vmatpush1.msra.mxu0 0.0
    %253 = vmatprep.subr.mxu0 0.0
    %254 = vmatpush1.msra.mxu0 0.0
    %255 = vmatprep.mubr.f32.mxu0 0.0
    %256 = vmatmul.mubr.f32.gmra.mrb[0].mxu0 %v180
    %v257 = vpop.f32.mrb[0].mxu0
    %v258 = vadd.f32 %v161, %v257
    %v259 = vpop.f32.mrb[0].mxu0
    %260 = vmatprep.mubr.f32.mxu0 0.0
    %261 = vmatmul.mubr.f32.gmra.mrb[0].mxu0 %v183
    %v262 = vpop.f32.mrb[0].mxu0
    %v263 = vadd.f32 %v166, %v262
    %v264 = vpop.f32.mrb[0].mxu0
    %265 = vmatprep.mubr.f32.mxu0 0.0
    %266 = vmatmul.mubr.f32.gmra.mrb[0].mxu0 %v186
    %v267 = vpop.f32.mrb[0].mxu0
    %v268 = vadd.f32 %v171, %v267
    %v269 = vpop.f32.mrb[0].mxu0
    %270 = vmatprep.mubr.f32.mxu0 0.0
    %271 = vmatmul.mubr.f32.gmra.mrb[0].mxu0 %v189
    %v272 = vpop.f32.mrb[0].mxu0
    %v273 = vadd.f32 %v176, %v272
    %v274 = vpop.f32.mrb[0].mxu0
    %275 = vdwg.mxu0
    %s276 = scalar_lea.vmem %s3, 32
    %v277 = vld [vmem:[%s276] sm:$0xff]
    %v278 = vld [vmem:[%s276 + $0x8] sm:$0xff]
    %v279 = vld [vmem:[%s276 + $0x10] sm:$0xff]
    %v280 = vld [vmem:[%s276 + $0x18] sm:$0xff]
    %s281 = scalar_lea.vmem %s4, 32
    %v282 = vld [vmem:[%s281] sm:$0xff]
    %v283 = vld [vmem:[%s281 + $0x8] sm:$0xff]
    %v284 = vld [vmem:[%s281 + $0x10] sm:$0xff]
    %v285 = vld [vmem:[%s281 + $0x18] sm:$0xff]
    %v286 = vtanh.pop %v258
    %v287 = vtanh.pop %v263
    %v288 = vtanh.pop %v268
    %v289 = vtanh.pop %v273
    %291 = vset.pattern.permute.xlu0 0
    %292 = vperm.xlu0 %291, %v282
    %v293 = vpop.permute.xlu0 %292
    %296 = vset.pattern.permute.xlu0 0
    %297 = vperm.xlu0 %296, %v283
    %v298 = vpop.permute.xlu0 %297
    %301 = vset.pattern.permute.xlu0 0
    %302 = vperm.xlu0 %301, %v284
    %v303 = vpop.permute.xlu0 %302
    %306 = vset.pattern.permute.xlu0 0
    %307 = vperm.xlu0 %306, %v285
    %v308 = vpop.permute.xlu0 %307
    %v311 = vsel %vm178, %v277, 0
    %v314 = vsel %vm178, %v278, 0
    %v317 = vsel %vm178, %v279, 0
    %v320 = vsel %vm178, %v280, 0
    %322 = vmatprep.subr.mxu0 0.0
    %323 = vmatpush1.msra.mxu0 %v286
    %324 = vmatprep.subr.mxu0 0.0
    %325 = vmatpush1.msra.mxu0 %v287
    %326 = vmatprep.subr.mxu0 0.0
    %327 = vmatpush1.msra.mxu0 %v288
    %328 = vmatprep.subr.mxu0 0.0
    %329 = vmatpush1.msra.mxu0 %v289
    %330 = vmatprep.subr.mxu0 0.0
    %331 = vmatpush1.msra.mxu0 0.0
    %332 = vmatprep.subr.mxu0 0.0
    %333 = vmatpush1.msra.mxu0 0.0
    %334 = vmatprep.subr.mxu0 0.0
    %335 = vmatpush1.msra.mxu0 0.0
    %336 = vmatprep.subr.mxu0 0.0
    %337 = vmatpush1.msra.mxu0 0.0
    %338 = vmatprep.subr.mxu0 0.0
    %339 = vmatpush1.msra.mxu0 0.0
    %340 = vmatprep.subr.mxu0 0.0
    %341 = vmatpush1.msra.mxu0 0.0
    %342 = vmatprep.subr.mxu0 0.0
    %343 = vmatpush1.msra.mxu0 0.0
    %344 = vmatprep.subr.mxu0 0.0
    %345 = vmatpush1.msra.mxu0 0.0
    %346 = vmatprep.subr.mxu0 0.0
    %347 = vmatpush1.msra.mxu0 0.0
    %348 = vmatprep.subr.mxu0 0.0
    %349 = vmatpush1.msra.mxu0 0.0
    %350 = vmatprep.subr.mxu0 0.0
    %351 = vmatpush1.msra.mxu0 0.0
    %352 = vmatprep.subr.mxu0 0.0
    %353 = vmatpush1.msra.mxu0 0.0
    %354 = vmatprep.subr.mxu0 0.0
    %355 = vmatpush1.msra.mxu0 0.0
    %356 = vmatprep.subr.mxu0 0.0
    %357 = vmatpush1.msra.mxu0 0.0
    %358 = vmatprep.subr.mxu0 0.0
    %359 = vmatpush1.msra.mxu0 0.0
    %360 = vmatprep.subr.mxu0 0.0
    %361 = vmatpush1.msra.mxu0 0.0
    %362 = vmatprep.subr.mxu0 0.0
    %363 = vmatpush1.msra.mxu0 0.0
    %364 = vmatprep.subr.mxu0 0.0
    %365 = vmatpush1.msra.mxu0 0.0
    %366 = vmatprep.subr.mxu0 0.0
    %367 = vmatpush1.msra.mxu0 0.0
    %368 = vmatprep.subr.mxu0 0.0
    %369 = vmatpush1.msra.mxu0 0.0
    %370 = vmatprep.subr.mxu0 0.0
    %371 = vmatpush1.msra.mxu0 0.0
    %372 = vmatprep.subr.mxu0 0.0
    %373 = vmatpush1.msra.mxu0 0.0
    %374 = vmatprep.subr.mxu0 0.0
    %375 = vmatpush1.msra.mxu0 0.0
    %376 = vmatprep.subr.mxu0 0.0
    %377 = vmatpush1.msra.mxu0 0.0
    %378 = vmatprep.subr.mxu0 0.0
    %379 = vmatpush1.msra.mxu0 0.0
    %380 = vmatprep.subr.mxu0 0.0
    %381 = vmatpush1.msra.mxu0 0.0
    %382 = vmatprep.subr.mxu0 0.0
    %383 = vmatpush1.msra.mxu0 0.0
    %384 = vmatprep.subr.mxu0 0.0
    %385 = vmatpush1.msra.mxu0 0.0
    %386 = vmatprep.mubr.f32.mxu0 0.0
    %387 = vmatmul.mubr.f32.gmra.mrb[0].mxu0 %v311
    %v388 = vpop.f32.mrb[0].mxu0
    %v389 = vadd.f32 %v293, %v388
    %v390 = vpop.f32.mrb[0].mxu0
    %391 = vmatprep.mubr.f32.mxu0 0.0
    %392 = vmatmul.mubr.f32.gmra.mrb[0].mxu0 %v314
    %v393 = vpop.f32.mrb[0].mxu0
    %v394 = vadd.f32 %v298, %v393
    %v395 = vpop.f32.mrb[0].mxu0
    %396 = vmatprep.mubr.f32.mxu0 0.0
    %397 = vmatmul.mubr.f32.gmra.mrb[0].mxu0 %v317
    %v398 = vpop.f32.mrb[0].mxu0
    %v399 = vadd.f32 %v303, %v398
    %v400 = vpop.f32.mrb[0].mxu0
    %401 = vmatprep.mubr.f32.mxu0 0.0
    %402 = vmatmul.mubr.f32.gmra.mrb[0].mxu0 %v320
    %v403 = vpop.f32.mrb[0].mxu0
    %v404 = vadd.f32 %v308, %v403
    %v405 = vpop.f32.mrb[0].mxu0
    %406 = vdwg.mxu0
    %v407 = vtanh.pop %v389
    %v408 = vtanh.pop %v394
    %v409 = vtanh.pop %v399
    %v410 = vtanh.pop %v404
    %v411 = vld [vmem:[%s5] sm:$0xff]
    %v412 = vld [vmem:[%s5 + $0x8] sm:$0xff]
    %v413 = vld [vmem:[%s5 + $0x10] sm:$0xff]
    %v414 = vld [vmem:[%s5 + $0x18] sm:$0xff]
    %416 = vset.pattern.permute.xlu0 0
    %417 = vperm.xlu0 %416, %v411
    %v418 = vpop.permute.xlu0 %417
    %421 = vset.pattern.permute.xlu0 0
    %422 = vperm.xlu0 %421, %v412
    %v423 = vpop.permute.xlu0 %422
    %426 = vset.pattern.permute.xlu0 0
    %427 = vperm.xlu0 %426, %v413
    %v428 = vpop.permute.xlu0 %427
    %431 = vset.pattern.permute.xlu0 0
    %432 = vperm.xlu0 %431, %v414
    %v433 = vpop.permute.xlu0 %432
    %v435 = vmul.f32 %v407, %v418
    %v436 = vmul.f32 %v408, %v423
    %v437 = vmul.f32 %v409, %v428
    %v438 = vmul.f32 %v410, %v433
    %v439 = vadd.f32 %v435, %v436
    %v440 = vadd.f32 %v439, %v437
    %v441 = vadd.f32 %v440, %v438
    %v442 = vrot.slane %v441, 4
    %v443 = vadd.f32 %v441, %v442
    %v444 = vrot.slane %v443, 2
    %v445 = vadd.f32 %v443, %v444
    %v446 = vrot.slane %v445, 1
    %v447 = vadd.f32 %v445, %v446
    %v448 = vld [vmem:[#allocation2] sm:$0x1]
    %450 = vset.pattern.permute.xlu0 0
    %451 = vperm.xlu0 %450, %v448
    %v452 = vpop.permute.xlu0 %451
    %v454 = vlaneseq
    %v455 = vshrl.u32 %v454, 7
    %v456 = vsub.s32 0, %v455
    %v457 = vrot.slane %v452, %v456
    %v458 = vadd.f32 %v447, %v457
    %459 = vst [vmem:[#allocation3] sm:$0x1] %v458
    // Predicated region
    $region30: #{tpu_custom_call.1} parent=1 // pred_check
      _
    $region31: #{tpu_custom_call.1} parent=1 // pred_check_branch
      %461 = sbr.rel (0) target = $region33
    $region32: #{tpu_custom_call.1} parent=1 // pred_region
      %s463 = ssub.s32 16, 16
      %464 = vsyncadd [#allocation4], %s463
      %s466 = sshll.u32 [#allocation3], 4
      %s467 = int_to_ptr.vmem [resolvable:$true] %s466
      %469 = dma.vmem_to_hbm [thread:$0]  %s467, 16, %s7, [#allocation4]
    $region33: #{tpu_custom_call.1} parent=1 // pred_fallthru
      _
    // Predicated region
    $region34: #{tpu_custom_call.1} parent=1 // pred_check
      _
    $region35: #{tpu_custom_call.1} parent=1 // pred_check_branch
      %471 = sbr.rel (0) target = $region37
    $region36: #{tpu_custom_call.1} parent=1 // pred_region
      %472 = dma.done [#allocation4], 16
    $region37: #{tpu_custom_call.1} parent=1 // pred_fallthru
      _
    %473 = vsyncpa [#allocation4], 1

</llo_original>
